<compile_context>
chip_gen: v7x
topology: tpu7x:2x2x1
jax: 0.10.0
libtpu: 0.0.40
codegen_flags: <defaults>
</compile_context>

<pallas_src>
import jax
import jax.numpy as jnp
from jax import lax
from jax.experimental import pallas as pl
from jax.experimental.pallas import tpu as pltpu

LN_EPS = 1e-5  # nn.LayerNorm default


def _round_up(x, m):
    return (x + m - 1) // m * m


def _chip_info():
    """(vmem_capacity_bytes, is_v7x) with conservative fallbacks."""
    kind = ""
    try:
        kind = jax.devices()[0].device_kind.lower()
    except Exception:
        pass
    is_v7 = "v7" in kind
    vmem_cap = 64 * 2**20 if is_v7 else 128 * 2**20
    try:
        info = pltpu.get_tpu_info()
        vmem_cap = int(getattr(info, "vmem_capacity_bytes", vmem_cap))
    except Exception:
        pass
    return vmem_cap, is_v7


def _pick_tm(B, row_mult, in_p, out_p, itemsize, is_v7, vmem_cap):
    """Row-tile size: big tiles on single-TC chips, even tile counts on v7x."""
    B = int(B)
    if B <= 128:
        return _round_up(max(B, row_mult), row_mult)

    def tile_bytes(t):
        # double-buffered x/out tiles + ~3 f32 temporaries for the LN epilogue
        return 2 * t * (in_p + out_p) * itemsize + 3 * t * out_p * 4

    budget = min(vmem_cap // 2, 40 * 2**20)
    cands = [c for c in (512, 256, 128) if c % row_mult == 0 and c <= B]
    if is_v7:
        # Prefer an even (ideally >=4) number of row tiles so both TensorCores
        # get the same number of tiles when the batch axis is sharded.
        for need_four in (True, False):
            for c in cands:
                n = -(-B // c)
                if tile_bytes(c) <= budget and n % 2 == 0 and (n >= 4 or not need_four):
                    return c
    for c in cands:
        if tile_bytes(c) <= budget:
            return c
    return _round_up(128, row_mult)


# ----------------------------------------------------------------------------
# Kernels
# ----------------------------------------------------------------------------
def _layer_norm_epilogue(y, g_ref, beta_ref, out_f, out_p):
    """ReLU'd activations -> LayerNorm(out_f) with padded lanes masked out."""
    inv_n = 1.0 / float(out_f)
    mean = jnp.sum(y, axis=-1, keepdims=True) * inv_n
    centered = y - mean
    if out_p != out_f:
        lane = lax.broadcasted_iota(jnp.int32, y.shape, 1)
        cm = jnp.where(lane < out_f, centered, 0.0)
    else:
        cm = centered
    # Two-pass variance (numerically robust; cheap VPU ops hidden under matmul).
    var = jnp.sum(cm * cm, axis=-1, keepdims=True) * inv_n
    rstd = lax.rsqrt(var + LN_EPS)
    scale = g_ref[...].astype(jnp.float32) * rstd  # fold gamma into rstd
    return centered * scale + beta_ref[...].astype(jnp.float32)


def _make_fused_kernel(out_f, out_p):
    """Weight fully resident in VMEM; one grid axis over row tiles."""

    def kernel(x_ref, w_ref, b_ref, g_ref, beta_ref, o_ref):
        y = jnp.dot(x_ref[...], w_ref[...], preferred_element_type=jnp.float32)
        y = jnp.maximum(y + b_ref[...].astype(jnp.float32), 0.0)
        out = _layer_norm_epilogue(y, g_ref, beta_ref, out_f, out_p)
        # TODO(synk): training-mode Dropout(p=0.1) omitted (eval semantics);
        # add with pltpu.prng_seed + pltpu.stateful_bernoulli if needed.
        o_ref[...] = out.astype(o_ref.dtype)

    return kernel


def _make_ktiled_kernel(out_f, out_p):
    """K-tiled fallback: reduction axis over in_p with an f32 VMEM accumulator."""

    def kernel(x_ref, w_ref, b_ref, g_ref, beta_ref, o_ref, acc_ref):
        k = pl.program_id(1)

        @pl.when(k == 0)
        def _():
            acc_ref[...] = jnp.zeros_like(acc_ref)

        acc_ref[...] += jnp.dot(x_ref[...], w_ref[...],
                                preferred_element_type=jnp.float32)

        @pl.when(k == pl.num_programs(1) - 1)
        def _():
            y = jnp.maximum(acc_ref[...] + b_ref[...].astype(jnp.float32), 0.0)
            out = _layer_norm_epilogue(y, g_ref, beta_ref, out_f, out_p)
            o_ref[...] = out.astype(o_ref.dtype)

    return kernel


# ----------------------------------------------------------------------------
# Parameter prep (one-time) and wrapper
# ----------------------------------------------------------------------------
def prepare_params(w_t, b, gamma, beta):
    """One-time prep: pad feature axes to multiples of 128, reshape vectors.

    w_t: [in_f, out_f] (nn.Linear weight, pre-transposed). Returns a dict that
    can be reused across calls so no per-call padding of the parameters occurs.
    """
    in_f, out_f = w_t.shape
    in_p = _round_up(in_f, 128)
    out_p = _round_up(out_f, 128)
    if (in_p, out_p) != (in_f, out_f):
        # Zero-padding is exact: padded in_f rows multiply zero x-columns,
        # padded out_f lanes get zero weight/bias -> 0 after ReLU.
        w_t = jnp.pad(w_t, ((0, in_p - in_f), (0, out_p - out_f)))
    pad = out_p - out_f
    if pad:
        b = jnp.pad(b, (0, pad))
        gamma = jnp.pad(gamma, (0, pad))
        beta = jnp.pad(beta, (0, pad))
    return dict(
        w_t=w_t,
        b=b.reshape(1, out_p),
        gamma=gamma.reshape(1, out_p),
        beta=beta.reshape(1, out_p),
        in_f=in_f,
        out_f=out_f,
    )


def mlp_block(x, params, *, tm=None, weight_budget_bytes=None):
    """x: [B, in_f]; params: output of prepare_params()."""
    B, in_f = x.shape
    w_t = params["w_t"]
    b2, g2, be2 = params["b"], params["gamma"], params["beta"]
    in_p, out_p = w_t.shape
    out_f = params["out_f"]
    assert params["in_f"] == in_f

    # Pad x along the contraction axis only (batch stays ragged).
    if in_p != in_f:
        x = jnp.pad(x, ((0, 0), (0, in_p - in_f)))

    itemsize = jnp.dtype(x.dtype).itemsize
    w_itemsize = jnp.dtype(w_t.dtype).itemsize
    vmem_cap, is_v7 = _chip_info()
    vmem_hi = min(int(vmem_cap * 0.85), 56 * 2**20 if is_v7 else 100 * 2**20)

    row_mult = 16 if x.dtype == jnp.bfloat16 else 8
    if tm is None:
        tm = _pick_tm(B, row_mult, in_p, out_p, itemsize, is_v7, vmem_cap)
    n_row = pl.cdiv(B, tm)

    weight_bytes = in_p * out_p * w_itemsize
    if weight_budget_bytes is None:
        weight_budget_bytes = 24 * 2**20 if is_v7 else 48 * 2**20
    use_ktiled = weight_bytes > weight_budget_bytes

    cost = pl.CostEstimate(
        flops=2 * B * in_p * out_p,
        transcendentals=B,  # one rsqrt per row
        bytes_accessed=(B * (in_p + out_p)) * itemsize
        + weight_bytes + 3 * out_p * w_itemsize,
    )

    const_kw = dict(pipeline_mode=pl.Buffered(1))  # constant index -> 1 buffer

    if not use_ktiled:
        # Weight resident in VMEM (single-buffered), 1-D parallel row grid.
        working = (weight_bytes
                   + 2 * tm * (in_p + out_p) * itemsize
                   + 3 * tm * out_p * 4
                   + 3 * out_p * w_itemsize)
        vmem_limit = int(min(max(working * 3 // 2, 32 * 2**20), vmem_hi))

        # On v7x tiny feature dims are latency-bound: deepen the x pipeline.
        x_kw = {}
        if is_v7 and in_p <= 256 and out_p <= 256 and n_row >= 4:
            x_kw = dict(pipeline_mode=pl.Buffered(3))

        out = pl.pallas_call(
            _make_fused_kernel(out_f, out_p),
            out_shape=jax.ShapeDtypeStruct((B, out_p), x.dtype),
            grid_spec=pltpu.PrefetchScalarGridSpec(
                num_scalar_prefetch=0,
                grid=(n_row,),
                in_specs=[
                    pl.BlockSpec((tm, in_p), lambda i: (i, 0), **x_kw),
                    pl.BlockSpec((in_p, out_p), lambda i: (0, 0), **const_kw),
                    pl.BlockSpec((1, out_p), lambda i: (0, 0), **const_kw),
                    pl.BlockSpec((1, out_p), lambda i: (0, 0), **const_kw),
                    pl.BlockSpec((1, out_p), lambda i: (0, 0), **const_kw),
                ],
                out_specs=pl.BlockSpec((tm, out_p), lambda i: (i, 0)),
            ),
            compiler_params=pltpu.CompilerParams(
                dimension_semantics=("parallel",),
                vmem_limit_bytes=vmem_limit),
            cost_estimate=cost,
        )(x, w_t, b2, g2, be2)
    else:
        # K-tiled fallback: weight streamed in (tk, out_p) slabs, f32 accumulator.
        slab_budget = max(min(weight_budget_bytes, 16 * 2**20) // 2, 1)
        tk = 128
        for c in (2048, 1024, 512, 256):
            if in_p % c == 0 and c * out_p * w_itemsize <= slab_budget:
                tk = c
                break
        n_k = in_p // tk

        working = (2 * tk * out_p * w_itemsize      # double-buffered weight slabs
                   + 2 * tm * tk * itemsize          # double-buffered x tiles
                   + 2 * tm * out_p * itemsize       # double-buffered out tiles
                   + 4 * tm * out_p * 4              # f32 accumulator + epilogue temps
                   + 3 * out_p * w_itemsize)
        vmem_limit = int(min(max(working * 3 // 2, 32 * 2**20), vmem_hi))

        out = pl.pallas_call(
            _make_ktiled_kernel(out_f, out_p),
            out_shape=jax.ShapeDtypeStruct((B, out_p), x.dtype),
            grid_spec=pltpu.PrefetchScalarGridSpec(
                num_scalar_prefetch=0,
                grid=(n_row, n_k),
                in_specs=[
                    pl.BlockSpec((tm, tk), lambda i, k: (i, k)),
                    pl.BlockSpec((tk, out_p), lambda i, k: (k, 0)),
                    pl.BlockSpec((1, out_p), lambda i, k: (0, 0), **const_kw),
                    pl.BlockSpec((1, out_p), lambda i, k: (0, 0), **const_kw),
                    pl.BlockSpec((1, out_p), lambda i, k: (0, 0), **const_kw),
                ],
                out_specs=pl.BlockSpec((tm, out_p), lambda i, k: (i, 0)),
                scratch_shapes=[pltpu.VMEM((tm, out_p), jnp.float32)],
            ),
            compiler_params=pltpu.CompilerParams(
                dimension_semantics=("parallel", "arbitrary"),
                vmem_limit_bytes=vmem_limit),
            cost_estimate=cost,
        )(x, w_t, b2, g2, be2)

    if out_p != out_f:
        out = out[:, :out_f]
    return out


# ----------------------------------------------------------------------------
# Reference + test harness
# ----------------------------------------------------------------------------
def mlp_block_ref(x, w_t, b, gamma, beta):
    """Pure-JAX reference (nn.Linear -> ReLU -> nn.LayerNorm, eval dropout)."""
    y = jnp.maximum(x @ w_t + b, 0.0)
    mean = jnp.mean(y, axis=-1, keepdims=True)
    var = jnp.mean(jnp.square(y - mean), axis=-1, keepdims=True)
    y = (y - mean) * lax.rsqrt(var + LN_EPS)
    return y * gamma + beta


def _make_raw_params(key, in_f, out_f):
    k_w, k_b, k_g, k_be = jax.random.split(key, 4)
    bound = 1.0 / (in_f ** 0.5)  # nn.Linear-like init
    w = jax.random.uniform(k_w, (out_f, in_f), minval=-bound, maxval=bound,
                           dtype=jnp.float32)
    b = jax.random.uniform(k_b, (out_f,), minval=-bound, maxval=bound,
                           dtype=jnp.float32)
    gamma = jnp.ones((out_f,), jnp.float32) \
        + 0.01 * jax.random.normal(k_g, (out_f,), dtype=jnp.float32)
    beta = 0.01 * jax.random.normal(k_be, (out_f,), dtype=jnp.float32)
    return jnp.asarray(w.T), b, gamma, beta  # weight pre-transposed: [in_f, out_f]


if __name__ == "__main__":
    key = jax.random.PRNGKey(0)
    ks = jax.random.split(key, 6)

    # Case 1: lane-dense shapes, fused (resident-weight) path, multi-row grid.
    B1, in1, out1 = 256, 128, 128
    x1 = jax.random.normal(ks[0], (B1, in1), dtype=jnp.float32)
    w1, b1, g1, be1 = _make_raw_params(ks[1], in1, out1)
    p1 = prepare_params(w1, b1, g1, be1)
    o1 = jax.block_until_ready(mlp_block(x1, p1))
    r1 = mlp_block_ref(x1, w1, b1, g1, be1)
    assert o1.shape == (B1, out1)
    assert jnp.allclose(o1, r1, atol=1e-4, rtol=1e-4), "case 1 mismatch vs reference"

    # Case 2: ragged shapes exercising the feature-padding + ragged-batch path.
    B2, in2, out2 = 50, 96, 160
    x2 = jax.random.normal(ks[2], (B2, in2), dtype=jnp.float32)
    w2, b2, g2, be2 = _make_raw_params(ks[3], in2, out2)
    p2 = prepare_params(w2, b2, g2, be2)
    o2 = jax.block_until_ready(mlp_block(x2, p2))
    r2 = mlp_block_ref(x2, w2, b2, g2, be2)
    assert o2.shape == (B2, out2)
    assert jnp.allclose(o2, r2, atol=1e-4, rtol=1e-4), "case 2 mismatch vs reference"

    # Case 3: force the K-tiled fallback (weight budget set tiny) at small shapes.
    B3, in3, out3 = 64, 256, 128
    x3 = jax.random.normal(ks[4], (B3, in3), dtype=jnp.float32)
    w3, b3, g3, be3 = _make_raw_params(ks[5], in3, out3)
    p3 = prepare_params(w3, b3, g3, be3)
    o3 = jax.block_until_ready(mlp_block(x3, p3, weight_budget_bytes=1))
    r3 = mlp_block_ref(x3, w3, b3, g3, be3)
    assert o3.shape == (B3, out3)
    assert jnp.allclose(o3, r3, atol=1e-4, rtol=1e-4), "case 3 mismatch vs reference"

    print("KERNEL_OK")
</pallas_src>

<mosaic_0001>
module attributes {stable_mosaic.version = 11 : i64} {
  func.func @kernel(%arg0: i32, %arg1: memref<256x128xf32, #tpu.memory_space<vmem>>, %arg2: memref<128x128xf32, #tpu.memory_space<vmem>>, %arg3: memref<1x128xf32, #tpu.memory_space<vmem>>, %arg4: memref<1x128xf32, #tpu.memory_space<vmem>>, %arg5: memref<1x128xf32, #tpu.memory_space<vmem>>, %arg6: memref<256x128xf32, #tpu.memory_space<vmem>>) attributes {dimension_semantics = [#tpu.dimension_semantics<parallel>], iteration_bounds = array<i64: 1>, scalar_prefetch = 0 : i64, scratch_operands = 0 : i64, tpu.core_type = #tpu.core_type<tc>, window_params = [{transform_indices = @transform_0, window_bounds = array<i64: 256, 128>}, {pipeline_mode = #tpu.pipeline_mode<synchronous>, transform_indices = @transform_1, window_bounds = array<i64: 128, 128>}, {pipeline_mode = #tpu.pipeline_mode<synchronous>, transform_indices = @transform_2, window_bounds = array<i64: 1, 128>}, {pipeline_mode = #tpu.pipeline_mode<synchronous>, transform_indices = @transform_3, window_bounds = array<i64: 1, 128>}, {pipeline_mode = #tpu.pipeline_mode<synchronous>, transform_indices = @transform_4, window_bounds = array<i64: 1, 128>}, {transform_indices = @transform_5, window_bounds = array<i64: 256, 128>}]} {
    %c0 = arith.constant 0 : index
    %c0_0 = arith.constant 0 : index
    %0 = vector.load %arg1[%c0, %c0_0] : memref<256x128xf32, #tpu.memory_space<vmem>>, vector<256x128xf32>
    %c0_1 = arith.constant 0 : index
    %c0_2 = arith.constant 0 : index
    %1 = vector.load %arg2[%c0_1, %c0_2] : memref<128x128xf32, #tpu.memory_space<vmem>>, vector<128x128xf32>
    %cst = arith.constant dense<0.000000e+00> : vector<256x128xf32>
    %2 = tpu.matmul %0, %1, %cst {dimension_numbers = #tpu.dot_dimension_numbers<[1], [0], [0], [1], [0, 0, 1, 1], [], []>} : vector<256x128xf32>, vector<128x128xf32>, vector<256x128xf32> -> vector<256x128xf32>
    %c0_3 = arith.constant 0 : index
    %c0_4 = arith.constant 0 : index
    %3 = vector.load %arg3[%c0_3, %c0_4] : memref<1x128xf32, #tpu.memory_space<vmem>>, vector<1x128xf32>
    %4 = vector.broadcast %3 : vector<1x128xf32> to vector<256x128xf32>
    %5 = arith.addf %2, %4 : vector<256x128xf32>
    %cst_5 = arith.constant 0.000000e+00 : f32
    %6 = vector.broadcast %cst_5 : f32 to vector<256x128xf32>
    %7 = arith.maximumf %5, %6 : vector<256x128xf32>
    %cst_6 = arith.constant dense<0.000000e+00> : vector<256xf32>
    %8 = vector.multi_reduction <add>, %7, %cst_6 [1] : vector<256x128xf32> to vector<256xf32>
    %9 = vector.shape_cast %8 : vector<256xf32> to vector<256x1xf32>
    %cst_7 = arith.constant 7.812500e-03 : f32
    %10 = vector.broadcast %cst_7 : f32 to vector<256x1xf32>
    %11 = arith.mulf %9, %10 : vector<256x1xf32>
    %12 = vector.broadcast %11 : vector<256x1xf32> to vector<256x128xf32>
    %13 = arith.subf %7, %12 : vector<256x128xf32>
    %14 = arith.mulf %13, %13 : vector<256x128xf32>
    %cst_8 = arith.constant dense<0.000000e+00> : vector<256xf32>
    %15 = vector.multi_reduction <add>, %14, %cst_8 [1] : vector<256x128xf32> to vector<256xf32>
    %16 = vector.shape_cast %15 : vector<256xf32> to vector<256x1xf32>
    %cst_9 = arith.constant 7.812500e-03 : f32
    %17 = vector.broadcast %cst_9 : f32 to vector<256x1xf32>
    %18 = arith.mulf %16, %17 : vector<256x1xf32>
    %cst_10 = arith.constant 9.99999974E-6 : f32
    %19 = vector.broadcast %cst_10 : f32 to vector<256x1xf32>
    %20 = arith.addf %18, %19 : vector<256x1xf32>
    %21 = math.rsqrt %20 : vector<256x1xf32>
    %c0_11 = arith.constant 0 : index
    %c0_12 = arith.constant 0 : index
    %22 = vector.load %arg4[%c0_11, %c0_12] : memref<1x128xf32, #tpu.memory_space<vmem>>, vector<1x128xf32>
    %23 = vector.broadcast %22 : vector<1x128xf32> to vector<256x128xf32>
    %24 = vector.broadcast %21 : vector<256x1xf32> to vector<256x128xf32>
    %25 = arith.mulf %23, %24 : vector<256x128xf32>
    %26 = arith.mulf %13, %25 : vector<256x128xf32>
    %c0_13 = arith.constant 0 : index
    %c0_14 = arith.constant 0 : index
    %27 = vector.load %arg5[%c0_13, %c0_14] : memref<1x128xf32, #tpu.memory_space<vmem>>, vector<1x128xf32>
    %28 = vector.broadcast %27 : vector<1x128xf32> to vector<256x128xf32>
    %29 = arith.addf %26, %28 : vector<256x128xf32>
    %c0_15 = arith.constant 0 : index
    %c0_16 = arith.constant 0 : index
    %30 = vector.load %arg6[%c0_15, %c0_16] : memref<256x128xf32, #tpu.memory_space<vmem>>, vector<256x128xf32>
    tpu.vector_store %arg6[%c0_15, %c0_16], %29 {strides = array<i32>} : memref<256x128xf32, #tpu.memory_space<vmem>>, vector<256x128xf32>,
    return
  }
  func.func @transform_0(%arg0: i32) -> (i32, i32) {
    %c0_i32 = arith.constant 0 : i32
    %c0_i32_0 = arith.constant 0 : i32
    return %arg0, %c0_i32 : i32, i32
  }
  func.func @transform_1(%arg0: i32) -> (i32, i32) {
    %c0_i32 = arith.constant 0 : i32
    %c0_i32_0 = arith.constant 0 : i32
    %c0_i32_1 = arith.constant 0 : i32
    return %c0_i32, %c0_i32_0 : i32, i32
  }
  func.func @transform_2(%arg0: i32) -> (i32, i32) {
    %c0_i32 = arith.constant 0 : i32
    %c0_i32_0 = arith.constant 0 : i32
    %c0_i32_1 = arith.constant 0 : i32
    return %c0_i32, %c0_i32_0 : i32, i32
  }
  func.func @transform_3(%arg0: i32) -> (i32, i32) {
    %c0_i32 = arith.constant 0 : i32
    %c0_i32_0 = arith.constant 0 : i32
    %c0_i32_1 = arith.constant 0 : i32
    return %c0_i32, %c0_i32_0 : i32, i32
  }
  func.func @transform_4(%arg0: i32) -> (i32, i32) {
    %c0_i32 = arith.constant 0 : i32
    %c0_i32_0 = arith.constant 0 : i32
    %c0_i32_1 = arith.constant 0 : i32
    return %c0_i32, %c0_i32_0 : i32, i32
  }
  func.func @transform_5(%arg0: i32) -> (i32, i32) {
    %c0_i32 = arith.constant 0 : i32
    %c0_i32_0 = arith.constant 0 : i32
    return %arg0, %c0_i32 : i32, i32
  }
}

</mosaic_0001>

<llo_original>
// kernel: tpu_custom_call.1
$region0: #{tpu_custom_call.1}
  #allocation0 [shape = 'u32[]', space=smem, size = 0x4, offset = 0x4, fixed_abs, tag = 'smem constant byte address 0x4 - core index']
  #allocation1 [shape = 'u32[144,128]{1,0:T(1,128)}', space=vmem, size = 0x12000, scoped, tag = 'internal scratch']
  %s0 = inlined_call_operand.hbm [shape: f32[256,128], index: 0, kind: input, shape index: {}]
  %s1 = inlined_call_operand.hbm [shape: f32[128,128], index: 1, kind: input, shape index: {}]
  %s2 = inlined_call_operand.vmem [shape: f32[1,128], index: 2, kind: input, shape index: {}]
  %s3 = inlined_call_operand.vmem [shape: f32[1,128], index: 3, kind: input, shape index: {}]
  %s4 = inlined_call_operand.vmem [shape: f32[1,128], index: 4, kind: input, shape index: {}]
  %s5 = inlined_call_operand.hbm [shape: f32[256,128], index: 5, kind: output, shape index: {}]
  %s6 = sld [smem:[#allocation0]]
  $region38: #{tpu_custom_call.1} parent=0
    _
  %s8 = ssub.s32 1, %s6
  %s9 = scalar_select 0, %s8, %s6
  $region1: #{tpu_custom_call.1} parent=0
    #allocation2 [shape = 'u8[131072]{0}', space=vmem, size = 0x20000, scoped, tag = 'input window, operand 0, single buffered']
    #allocation3 [shape = 's32[1]{0}', space=sflag, size = 0x4, scoped, tag = 'scoped memory for tpu_custom_call.1']
    #allocation4 [shape = 's32[1]{0}', space=sflag, size = 0x4, scoped, tag = 'scoped memory for tpu_custom_call.1']
    #allocation5 [shape = 'u8[65536]{0}', space=vmem, size = 0x10000, scoped, tag = 'input window, operand 1, single buffered']
    #allocation6 [shape = 's32[1]{0}', space=sflag, size = 0x4, scoped, tag = 'scoped memory for tpu_custom_call.1']
    #allocation7 [shape = 'u8[131072]{0}', space=vmem, size = 0x20000, scoped, tag = 'output window, operand 0, single buffered']
    %10 = vsyncpa [#allocation3], 0
    %11 = vsyncpa [#allocation6], 0
    %12 = vsyncpa [#allocation4], 0
    // Predicated region
    $region2: #{tpu_custom_call.1} parent=1 // pred_check
      _
    $region3: #{tpu_custom_call.1} parent=1 // pred_check_branch
      %14 = sbr.rel (0) target = $region5
    $region4: #{tpu_custom_call.1} parent=1 // pred_region
      %s16 = ssub.s32 4096, 4096
      %17 = vsyncadd [#allocation3], %s16
      %s18 = sshll.u32 [#allocation2], 4
      %s19 = int_to_ptr.vmem [resolvable:$true] %s18
      %24 = dma.hbm_to_vmem [thread:$0]  %s0, 4096, %s19, [#allocation3], 128, 128, 8
    $region5: #{tpu_custom_call.1} parent=1 // pred_fallthru
      _
    // Predicated region
    $region6: #{tpu_custom_call.1} parent=1 // pred_check
      _
    $region7: #{tpu_custom_call.1} parent=1 // pred_check_branch
      %26 = sbr.rel (0) target = $region9
    $region8: #{tpu_custom_call.1} parent=1 // pred_region
      %s28 = ssub.s32 2048, 2048
      %29 = vsyncadd [#allocation6], %s28
      %s30 = sshll.u32 [#allocation5], 4
      %s31 = int_to_ptr.vmem [resolvable:$true] %s30
      %36 = dma.hbm_to_vmem [thread:$0]  %s1, 2048, %s31, [#allocation6], 128, 128, 8
    $region9: #{tpu_custom_call.1} parent=1 // pred_fallthru
      _
    // Predicated region
    $region10: #{tpu_custom_call.1} parent=1 // pred_check
      _
    $region11: #{tpu_custom_call.1} parent=1 // pred_check_branch
      %38 = sbr.rel (0) target = $region13
    $region12: #{tpu_custom_call.1} parent=1 // pred_region
      _
    $region13: #{tpu_custom_call.1} parent=1 // pred_fallthru
      _
    // Predicated region
    $region14: #{tpu_custom_call.1} parent=1 // pred_check
      _
    $region15: #{tpu_custom_call.1} parent=1 // pred_check_branch
      %40 = sbr.rel (0) target = $region17
    $region16: #{tpu_custom_call.1} parent=1 // pred_region
      _
    $region17: #{tpu_custom_call.1} parent=1 // pred_fallthru
      _
    // Predicated region
    $region18: #{tpu_custom_call.1} parent=1 // pred_check
      _
    $region19: #{tpu_custom_call.1} parent=1 // pred_check_branch
      %42 = sbr.rel (0) target = $region21
    $region20: #{tpu_custom_call.1} parent=1 // pred_region
      _
    $region21: #{tpu_custom_call.1} parent=1 // pred_fallthru
      _
    // Predicated region
    $region22: #{tpu_custom_call.1} parent=1 // pred_check
      _
    $region23: #{tpu_custom_call.1} parent=1 // pred_check_branch
      %44 = sbr.rel (0) target = $region25
    $region24: #{tpu_custom_call.1} parent=1 // pred_region
      %45 = dma.done [#allocation3], 4096
    $region25: #{tpu_custom_call.1} parent=1 // pred_fallthru
      _
    // Predicated region
    $region26: #{tpu_custom_call.1} parent=1 // pred_check
      _
    $region27: #{tpu_custom_call.1} parent=1 // pred_check_branch
      %47 = sbr.rel (0) target = $region29
    $region28: #{tpu_custom_call.1} parent=1 // pred_region
      %48 = dma.done [#allocation6], 2048
    $region29: #{tpu_custom_call.1} parent=1 // pred_fallthru
      _
    %v49 = vld [vmem:[#allocation2] sm:$0xff]
    %v50 = vld [vmem:[#allocation2 + $0x8] sm:$0xff]
    %v51 = vld [vmem:[#allocation2 + $0x10] sm:$0xff]
    %v52 = vld [vmem:[#allocation2 + $0x18] sm:$0xff]
    %v53 = vld [vmem:[#allocation2 + $0x20] sm:$0xff]
    %v54 = vld [vmem:[#allocation2 + $0x28] sm:$0xff]
    %v55 = vld [vmem:[#allocation2 + $0x30] sm:$0xff]
    %v56 = vld [vmem:[#allocation2 + $0x38] sm:$0xff]
    %v57 = vld [vmem:[#allocation2 + $0x40] sm:$0xff]
    %v58 = vld [vmem:[#allocation2 + $0x48] sm:$0xff]
    %v59 = vld [vmem:[#allocation2 + $0x50] sm:$0xff]
    %v60 = vld [vmem:[#allocation2 + $0x58] sm:$0xff]
    %v61 = vld [vmem:[#allocation2 + $0x60] sm:$0xff]
    %v62 = vld [vmem:[#allocation2 + $0x68] sm:$0xff]
    %v63 = vld [vmem:[#allocation2 + $0x70] sm:$0xff]
    %v64 = vld [vmem:[#allocation2 + $0x78] sm:$0xff]
    %v65 = vld [vmem:[#allocation2 + $0x80] sm:$0xff]
    %v66 = vld [vmem:[#allocation2 + $0x88] sm:$0xff]
    %v67 = vld [vmem:[#allocation2 + $0x90] sm:$0xff]
    %v68 = vld [vmem:[#allocation2 + $0x98] sm:$0xff]
    %v69 = vld [vmem:[#allocation2 + $0xa0] sm:$0xff]
    %v70 = vld [vmem:[#allocation2 + $0xa8] sm:$0xff]
    %v71 = vld [vmem:[#allocation2 + $0xb0] sm:$0xff]
    %v72 = vld [vmem:[#allocation2 + $0xb8] sm:$0xff]
    %v73 = vld [vmem:[#allocation2 + $0xc0] sm:$0xff]
    %v74 = vld [vmem:[#allocation2 + $0xc8] sm:$0xff]
    %v75 = vld [vmem:[#allocation2 + $0xd0] sm:$0xff]
    %v76 = vld [vmem:[#allocation2 + $0xd8] sm:$0xff]
    %v77 = vld [vmem:[#allocation2 + $0xe0] sm:$0xff]
    %v78 = vld [vmem:[#allocation2 + $0xe8] sm:$0xff]
    %v79 = vld [vmem:[#allocation2 + $0xf0] sm:$0xff]
    %v80 = vld [vmem:[#allocation2 + $0xf8] sm:$0xff]
    %v81 = vld [vmem:[#allocation5] sm:$0xff]
    %v82 = vld [vmem:[#allocation5 + $0x8] sm:$0xff]
    %v83 = vld [vmem:[#allocation5 + $0x10] sm:$0xff]
    %v84 = vld [vmem:[#allocation5 + $0x18] sm:$0xff]
    %v85 = vld [vmem:[#allocation5 + $0x20] sm:$0xff]
    %v86 = vld [vmem:[#allocation5 + $0x28] sm:$0xff]
    %v87 = vld [vmem:[#allocation5 + $0x30] sm:$0xff]
    %v88 = vld [vmem:[#allocation5 + $0x38] sm:$0xff]
    %v89 = vld [vmem:[#allocation5 + $0x40] sm:$0xff]
    %v90 = vld [vmem:[#allocation5 + $0x48] sm:$0xff]
    %v91 = vld [vmem:[#allocation5 + $0x50] sm:$0xff]
    %v92 = vld [vmem:[#allocation5 + $0x58] sm:$0xff]
    %v93 = vld [vmem:[#allocation5 + $0x60] sm:$0xff]
    %v94 = vld [vmem:[#allocation5 + $0x68] sm:$0xff]
    %v95 = vld [vmem:[#allocation5 + $0x70] sm:$0xff]
    %v96 = vld [vmem:[#allocation5 + $0x78] sm:$0xff]
    %v97 = vld [vmem:[%s2] sm:$0x1]
    %v99 = vlaneseq
    %v100 = vshrl.u32 %v99, 7
    %v101 = vsub.s32 0, %v100
    %v102 = vrot.slane %v97, %v101
    %104 = vmatprep.subr.mxu0 0.0
    %105 = vmatpush1.msra.mxu0 %v81
    %106 = vmatprep.subr.mxu0 0.0
    %107 = vmatpush1.msra.mxu0 %v82
    %108 = vmatprep.subr.mxu0 0.0
    %109 = vmatpush1.msra.mxu0 %v83
    %110 = vmatprep.subr.mxu0 0.0
    %111 = vmatpush1.msra.mxu0 %v84
    %112 = vmatprep.subr.mxu0 0.0
    %113 = vmatpush1.msra.mxu0 %v85
    %114 = vmatprep.subr.mxu0 0.0
    %115 = vmatpush1.msra.mxu0 %v86
    %116 = vmatprep.subr.mxu0 0.0
    %117 = vmatpush1.msra.mxu0 %v87
    %118 = vmatprep.subr.mxu0 0.0
    %119 = vmatpush1.msra.mxu0 %v88
    %120 = vmatprep.subr.mxu0 0.0
    %121 = vmatpush1.msra.mxu0 %v89
    %122 = vmatprep.subr.mxu0 0.0
    %123 = vmatpush1.msra.mxu0 %v90
    %124 = vmatprep.subr.mxu0 0.0
    %125 = vmatpush1.msra.mxu0 %v91
    %126 = vmatprep.subr.mxu0 0.0
    %127 = vmatpush1.msra.mxu0 %v92
    %128 = vmatprep.subr.mxu0 0.0
    %129 = vmatpush1.msra.mxu0 %v93
    %130 = vmatprep.subr.mxu0 0.0
    %131 = vmatpush1.msra.mxu0 %v94
    %132 = vmatprep.subr.mxu0 0.0
    %133 = vmatpush1.msra.mxu0 %v95
    %134 = vmatprep.subr.mxu0 0.0
    %135 = vmatpush1.msra.mxu0 %v96
    %136 = vmatprep.subr.mxu0 0.0
    %137 = vmatpush1.msra.mxu0 0.0
    %138 = vmatprep.subr.mxu0 0.0
    %139 = vmatpush1.msra.mxu0 0.0
    %140 = vmatprep.subr.mxu0 0.0
    %141 = vmatpush1.msra.mxu0 0.0
    %142 = vmatprep.subr.mxu0 0.0
    %143 = vmatpush1.msra.mxu0 0.0
    %144 = vmatprep.subr.mxu0 0.0
    %145 = vmatpush1.msra.mxu0 0.0
    %146 = vmatprep.subr.mxu0 0.0
    %147 = vmatpush1.msra.mxu0 0.0
    %148 = vmatprep.subr.mxu0 0.0
    %149 = vmatpush1.msra.mxu0 0.0
    %150 = vmatprep.subr.mxu0 0.0
    %151 = vmatpush1.msra.mxu0 0.0
    %152 = vmatprep.subr.mxu0 0.0
    %153 = vmatpush1.msra.mxu0 0.0
    %154 = vmatprep.subr.mxu0 0.0
    %155 = vmatpush1.msra.mxu0 0.0
    %156 = vmatprep.subr.mxu0 0.0
    %157 = vmatpush1.msra.mxu0 0.0
    %158 = vmatprep.subr.mxu0 0.0
    %159 = vmatpush1.msra.mxu0 0.0
    %160 = vmatprep.subr.mxu0 0.0
    %161 = vmatpush1.msra.mxu0 0.0
    %162 = vmatprep.subr.mxu0 0.0
    %163 = vmatpush1.msra.mxu0 0.0
    %164 = vmatprep.subr.mxu0 0.0
    %165 = vmatpush1.msra.mxu0 0.0
    %166 = vmatprep.subr.mxu0 0.0
    %167 = vmatpush1.msra.mxu0 0.0
    %168 = vmatprep.mubr.f32.mxu0 0.0
    %169 = vmatmul.mubr.f32.gmra.mrb[0].mxu0 %v49
    %v170 = vpop.f32.mrb[0].mxu0
    %v171 = vadd.f32 %v102, %v170
    %v172 = vpop.f32.mrb[0].mxu0
    %173 = vmatprep.mubr.f32.mxu0 0.0
    %174 = vmatmul.mubr.f32.gmra.mrb[0].mxu0 %v50
    %v175 = vpop.f32.mrb[0].mxu0
    %v176 = vadd.f32 %v102, %v175
    %v177 = vpop.f32.mrb[0].mxu0
    %178 = vmatprep.mubr.f32.mxu0 0.0
    %179 = vmatmul.mubr.f32.gmra.mrb[0].mxu0 %v51
    %v180 = vpop.f32.mrb[0].mxu0
    %v181 = vadd.f32 %v102, %v180
    %v182 = vpop.f32.mrb[0].mxu0
    %183 = vmatprep.mubr.f32.mxu0 0.0
    %184 = vmatmul.mubr.f32.gmra.mrb[0].mxu0 %v52
    %v185 = vpop.f32.mrb[0].mxu0
    %v186 = vadd.f32 %v102, %v185
    %v187 = vpop.f32.mrb[0].mxu0
    %188 = vmatprep.mubr.f32.mxu0 0.0
    %189 = vmatmul.mubr.f32.gmra.mrb[0].mxu0 %v53
    %v190 = vpop.f32.mrb[0].mxu0
    %v191 = vadd.f32 %v102, %v190
    %v192 = vpop.f32.mrb[0].mxu0
    %193 = vmatprep.mubr.f32.mxu0 0.0
    %194 = vmatmul.mubr.f32.gmra.mrb[0].mxu0 %v54
    %v195 = vpop.f32.mrb[0].mxu0
    %v196 = vadd.f32 %v102, %v195
    %v197 = vpop.f32.mrb[0].mxu0
    %198 = vmatprep.mubr.f32.mxu0 0.0
    %199 = vmatmul.mubr.f32.gmra.mrb[0].mxu0 %v55
    %v200 = vpop.f32.mrb[0].mxu0
    %v201 = vadd.f32 %v102, %v200
    %v202 = vpop.f32.mrb[0].mxu0
    %203 = vmatprep.mubr.f32.mxu0 0.0
    %204 = vmatmul.mubr.f32.gmra.mrb[0].mxu0 %v56
    %v205 = vpop.f32.mrb[0].mxu0
    %v206 = vadd.f32 %v102, %v205
    %v207 = vpop.f32.mrb[0].mxu0
    %208 = vmatprep.mubr.f32.mxu0 0.0
    %209 = vmatmul.mubr.f32.gmra.mrb[0].mxu0 %v57
    %v210 = vpop.f32.mrb[0].mxu0
    %v211 = vadd.f32 %v102, %v210
    %v212 = vpop.f32.mrb[0].mxu0
    %213 = vmatprep.mubr.f32.mxu0 0.0
    %214 = vmatmul.mubr.f32.gmra.mrb[0].mxu0 %v58
    %v215 = vpop.f32.mrb[0].mxu0
    %v216 = vadd.f32 %v102, %v215
    %v217 = vpop.f32.mrb[0].mxu0
    %218 = vmatprep.mubr.f32.mxu0 0.0
    %219 = vmatmul.mubr.f32.gmra.mrb[0].mxu0 %v59
    %v220 = vpop.f32.mrb[0].mxu0
    %v221 = vadd.f32 %v102, %v220
    %v222 = vpop.f32.mrb[0].mxu0
    %223 = vmatprep.mubr.f32.mxu0 0.0
    %224 = vmatmul.mubr.f32.gmra.mrb[0].mxu0 %v60
    %v225 = vpop.f32.mrb[0].mxu0
    %v226 = vadd.f32 %v102, %v225
    %v227 = vpop.f32.mrb[0].mxu0
    %228 = vmatprep.mubr.f32.mxu0 0.0
    %229 = vmatmul.mubr.f32.gmra.mrb[0].mxu0 %v61
    %v230 = vpop.f32.mrb[0].mxu0
    %v231 = vadd.f32 %v102, %v230
    %v232 = vpop.f32.mrb[0].mxu0
    %233 = vmatprep.mubr.f32.mxu0 0.0
    %234 = vmatmul.mubr.f32.gmra.mrb[0].mxu0 %v62
    %v235 = vpop.f32.mrb[0].mxu0
    %v236 = vadd.f32 %v102, %v235
    %v237 = vpop.f32.mrb[0].mxu0
    %238 = vmatprep.mubr.f32.mxu0 0.0
    %239 = vmatmul.mubr.f32.gmra.mrb[0].mxu0 %v63
    %v240 = vpop.f32.mrb[0].mxu0
    %v241 = vadd.f32 %v102, %v240
    %v242 = vpop.f32.mrb[0].mxu0
    %243 = vmatprep.mubr.f32.mxu0 0.0
    %244 = vmatmul.mubr.f32.gmra.mrb[0].mxu0 %v64
    %v245 = vpop.f32.mrb[0].mxu0
    %v246 = vadd.f32 %v102, %v245
    %v247 = vpop.f32.mrb[0].mxu0
    %248 = vmatprep.mubr.f32.mxu0 0.0
    %249 = vmatmul.mubr.f32.gmra.mrb[0].mxu0 %v65
    %v250 = vpop.f32.mrb[0].mxu0
    %v251 = vadd.f32 %v102, %v250
    %v252 = vpop.f32.mrb[0].mxu0
    %253 = vmatprep.mubr.f32.mxu0 0.0
    %254 = vmatmul.mubr.f32.gmra.mrb[0].mxu0 %v66
    %v255 = vpop.f32.mrb[0].mxu0
    %v256 = vadd.f32 %v102, %v255
    %v257 = vpop.f32.mrb[0].mxu0
    %258 = vmatprep.mubr.f32.mxu0 0.0
    %259 = vmatmul.mubr.f32.gmra.mrb[0].mxu0 %v67
    %v260 = vpop.f32.mrb[0].mxu0
    %v261 = vadd.f32 %v102, %v260
    %v262 = vpop.f32.mrb[0].mxu0
    %263 = vmatprep.mubr.f32.mxu0 0.0
    %264 = vmatmul.mubr.f32.gmra.mrb[0].mxu0 %v68
    %v265 = vpop.f32.mrb[0].mxu0
    %v266 = vadd.f32 %v102, %v265
    %v267 = vpop.f32.mrb[0].mxu0
    %268 = vmatprep.mubr.f32.mxu0 0.0
    %269 = vmatmul.mubr.f32.gmra.mrb[0].mxu0 %v69
    %v270 = vpop.f32.mrb[0].mxu0
    %v271 = vadd.f32 %v102, %v270
    %v272 = vpop.f32.mrb[0].mxu0
    %273 = vmatprep.mubr.f32.mxu0 0.0
    %274 = vmatmul.mubr.f32.gmra.mrb[0].mxu0 %v70
    %v275 = vpop.f32.mrb[0].mxu0
    %v276 = vadd.f32 %v102, %v275
    %v277 = vpop.f32.mrb[0].mxu0
    %278 = vmatprep.mubr.f32.mxu0 0.0
    %279 = vmatmul.mubr.f32.gmra.mrb[0].mxu0 %v71
    %v280 = vpop.f32.mrb[0].mxu0
    %v281 = vadd.f32 %v102, %v280
    %v282 = vpop.f32.mrb[0].mxu0
    %283 = vmatprep.mubr.f32.mxu0 0.0
    %284 = vmatmul.mubr.f32.gmra.mrb[0].mxu0 %v72
    %v285 = vpop.f32.mrb[0].mxu0
    %v286 = vadd.f32 %v102, %v285
    %v287 = vpop.f32.mrb[0].mxu0
    %288 = vmatprep.mubr.f32.mxu0 0.0
    %289 = vmatmul.mubr.f32.gmra.mrb[0].mxu0 %v73
    %v290 = vpop.f32.mrb[0].mxu0
    %v291 = vadd.f32 %v102, %v290
    %v292 = vpop.f32.mrb[0].mxu0
    %293 = vmatprep.mubr.f32.mxu0 0.0
    %294 = vmatmul.mubr.f32.gmra.mrb[0].mxu0 %v74
    %v295 = vpop.f32.mrb[0].mxu0
    %v296 = vadd.f32 %v102, %v295
    %v297 = vpop.f32.mrb[0].mxu0
    %298 = vmatprep.mubr.f32.mxu0 0.0
    %299 = vmatmul.mubr.f32.gmra.mrb[0].mxu0 %v75
    %v300 = vpop.f32.mrb[0].mxu0
    %v301 = vadd.f32 %v102, %v300
    %v302 = vpop.f32.mrb[0].mxu0
    %303 = vmatprep.mubr.f32.mxu0 0.0
    %304 = vmatmul.mubr.f32.gmra.mrb[0].mxu0 %v76
    %v305 = vpop.f32.mrb[0].mxu0
    %v306 = vadd.f32 %v102, %v305
    %v307 = vpop.f32.mrb[0].mxu0
    %308 = vmatprep.mubr.f32.mxu0 0.0
    %309 = vmatmul.mubr.f32.gmra.mrb[0].mxu0 %v77
    %v310 = vpop.f32.mrb[0].mxu0
    %v311 = vadd.f32 %v102, %v310
    %v312 = vpop.f32.mrb[0].mxu0
    %313 = vmatprep.mubr.f32.mxu0 0.0
    %314 = vmatmul.mubr.f32.gmra.mrb[0].mxu0 %v78
    %v315 = vpop.f32.mrb[0].mxu0
    %v316 = vadd.f32 %v102, %v315
    %v317 = vpop.f32.mrb[0].mxu0
    %318 = vmatprep.mubr.f32.mxu0 0.0
    %319 = vmatmul.mubr.f32.gmra.mrb[0].mxu0 %v79
    %v320 = vpop.f32.mrb[0].mxu0
    %v321 = vadd.f32 %v102, %v320
    %v322 = vpop.f32.mrb[0].mxu0
    %323 = vmatprep.mubr.f32.mxu0 0.0
    %324 = vmatmul.mubr.f32.gmra.mrb[0].mxu0 %v80
    %v325 = vpop.f32.mrb[0].mxu0
    %v326 = vadd.f32 %v102, %v325
    %v327 = vpop.f32.mrb[0].mxu0
    %328 = vdwg.mxu0
    %v329 = vmax.f32 %v171, 0.0
    %v330 = vmax.f32 %v176, 0.0
    %v331 = vmax.f32 %v181, 0.0
    %v332 = vmax.f32 %v186, 0.0
    %v333 = vmax.f32 %v191, 0.0
    %v334 = vmax.f32 %v196, 0.0
    %v335 = vmax.f32 %v201, 0.0
    %v336 = vmax.f32 %v206, 0.0
    %v337 = vmax.f32 %v211, 0.0
    %v338 = vmax.f32 %v216, 0.0
    %v339 = vmax.f32 %v221, 0.0
    %v340 = vmax.f32 %v226, 0.0
    %v341 = vmax.f32 %v231, 0.0
    %v342 = vmax.f32 %v236, 0.0
    %v343 = vmax.f32 %v241, 0.0
    %v344 = vmax.f32 %v246, 0.0
    %v345 = vmax.f32 %v251, 0.0
    %v346 = vmax.f32 %v256, 0.0
    %v347 = vmax.f32 %v261, 0.0
    %v348 = vmax.f32 %v266, 0.0
    %v349 = vmax.f32 %v271, 0.0
    %v350 = vmax.f32 %v276, 0.0
    %v351 = vmax.f32 %v281, 0.0
    %v352 = vmax.f32 %v286, 0.0
    %v353 = vmax.f32 %v291, 0.0
    %v354 = vmax.f32 %v296, 0.0
    %v355 = vmax.f32 %v301, 0.0
    %v356 = vmax.f32 %v306, 0.0
    %v357 = vmax.f32 %v311, 0.0
    %v358 = vmax.f32 %v316, 0.0
    %v359 = vmax.f32 %v321, 0.0
    %v360 = vmax.f32 %v326, 0.0
    %361 = vadd.xlane.f32.xlu0 %v329
    %v362 = vpop.xlane.xlu0 %361
    %363 = vadd.xlane.f32.xlu0 %v330
    %v364 = vpop.xlane.xlu0 %363
    %365 = vadd.xlane.f32.xlu0 %v331
    %v366 = vpop.xlane.xlu0 %365
    %367 = vadd.xlane.f32.xlu0 %v332
    %v368 = vpop.xlane.xlu0 %367
    %369 = vadd.xlane.f32.xlu0 %v333
    %v370 = vpop.xlane.xlu0 %369
    %371 = vadd.xlane.f32.xlu0 %v334
    %v372 = vpop.xlane.xlu0 %371
    %373 = vadd.xlane.f32.xlu0 %v335
    %v374 = vpop.xlane.xlu0 %373
    %375 = vadd.xlane.f32.xlu0 %v336
    %v376 = vpop.xlane.xlu0 %375
    %377 = vadd.xlane.f32.xlu0 %v337
    %v378 = vpop.xlane.xlu0 %377
    %379 = vadd.xlane.f32.xlu0 %v338
    %v380 = vpop.xlane.xlu0 %379
    %381 = vadd.xlane.f32.xlu0 %v339
    %v382 = vpop.xlane.xlu0 %381
    %383 = vadd.xlane.f32.xlu0 %v340
    %v384 = vpop.xlane.xlu0 %383
    %385 = vadd.xlane.f32.xlu0 %v341
    %v386 = vpop.xlane.xlu0 %385
    %387 = vadd.xlane.f32.xlu0 %v342
    %v388 = vpop.xlane.xlu0 %387
    %389 = vadd.xlane.f32.xlu0 %v343
    %v390 = vpop.xlane.xlu0 %389
    %391 = vadd.xlane.f32.xlu0 %v344
    %v392 = vpop.xlane.xlu0 %391
    %393 = vadd.xlane.f32.xlu0 %v345
    %v394 = vpop.xlane.xlu0 %393
    %395 = vadd.xlane.f32.xlu0 %v346
    %v396 = vpop.xlane.xlu0 %395
    %397 = vadd.xlane.f32.xlu0 %v347
    %v398 = vpop.xlane.xlu0 %397
    %399 = vadd.xlane.f32.xlu0 %v348
    %v400 = vpop.xlane.xlu0 %399
    %401 = vadd.xlane.f32.xlu0 %v349
    %v402 = vpop.xlane.xlu0 %401
    %403 = vadd.xlane.f32.xlu0 %v350
    %v404 = vpop.xlane.xlu0 %403
    %405 = vadd.xlane.f32.xlu0 %v351
    %v406 = vpop.xlane.xlu0 %405
    %407 = vadd.xlane.f32.xlu0 %v352
    %v408 = vpop.xlane.xlu0 %407
    %409 = vadd.xlane.f32.xlu0 %v353
    %v410 = vpop.xlane.xlu0 %409
    %411 = vadd.xlane.f32.xlu0 %v354
    %v412 = vpop.xlane.xlu0 %411
    %413 = vadd.xlane.f32.xlu0 %v355
    %v414 = vpop.xlane.xlu0 %413
    %415 = vadd.xlane.f32.xlu0 %v356
    %v416 = vpop.xlane.xlu0 %415
    %417 = vadd.xlane.f32.xlu0 %v357
    %v418 = vpop.xlane.xlu0 %417
    %419 = vadd.xlane.f32.xlu0 %v358
    %v420 = vpop.xlane.xlu0 %419
    %421 = vadd.xlane.f32.xlu0 %v359
    %v422 = vpop.xlane.xlu0 %421
    %423 = vadd.xlane.f32.xlu0 %v360
    %v424 = vpop.xlane.xlu0 %423
    %v425 = vmul.f32 %v362, 0.0078125
    %v426 = vmul.f32 %v364, 0.0078125
    %v427 = vmul.f32 %v366, 0.0078125
    %v428 = vmul.f32 %v368, 0.0078125
    %v429 = vmul.f32 %v370, 0.0078125
    %v430 = vmul.f32 %v372, 0.0078125
    %v431 = vmul.f32 %v374, 0.0078125
    %v432 = vmul.f32 %v376, 0.0078125
    %v433 = vmul.f32 %v378, 0.0078125
    %v434 = vmul.f32 %v380, 0.0078125
    %v435 = vmul.f32 %v382, 0.0078125
    %v436 = vmul.f32 %v384, 0.0078125
    %v437 = vmul.f32 %v386, 0.0078125
    %v438 = vmul.f32 %v388, 0.0078125
    %v439 = vmul.f32 %v390, 0.0078125
    %v440 = vmul.f32 %v392, 0.0078125
    %v441 = vmul.f32 %v394, 0.0078125
    %v442 = vmul.f32 %v396, 0.0078125
    %v443 = vmul.f32 %v398, 0.0078125
    %v444 = vmul.f32 %v400, 0.0078125
    %v445 = vmul.f32 %v402, 0.0078125
    %v446 = vmul.f32 %v404, 0.0078125
    %v447 = vmul.f32 %v406, 0.0078125
    %v448 = vmul.f32 %v408, 0.0078125
    %v449 = vmul.f32 %v410, 0.0078125
    %v450 = vmul.f32 %v412, 0.0078125
    %v451 = vmul.f32 %v414, 0.0078125
    %v452 = vmul.f32 %v416, 0.0078125
    %v453 = vmul.f32 %v418, 0.0078125
    %v454 = vmul.f32 %v420, 0.0078125
    %v455 = vmul.f32 %v422, 0.0078125
    %v456 = vmul.f32 %v424, 0.0078125
    %v457 = vsub.f32 %v329, %v425
    %v458 = vsub.f32 %v330, %v426
    %v459 = vsub.f32 %v331, %v427
    %v460 = vsub.f32 %v332, %v428
    %v461 = vsub.f32 %v333, %v429
    %v462 = vsub.f32 %v334, %v430
    %v463 = vsub.f32 %v335, %v431
    %v464 = vsub.f32 %v336, %v432
    %v465 = vsub.f32 %v337, %v433
    %v466 = vsub.f32 %v338, %v434
    %v467 = vsub.f32 %v339, %v435
    %v468 = vsub.f32 %v340, %v436
    %v469 = vsub.f32 %v341, %v437
    %v470 = vsub.f32 %v342, %v438
    %v471 = vsub.f32 %v343, %v439
    %v472 = vsub.f32 %v344, %v440
    %v473 = vsub.f32 %v345, %v441
    %v474 = vsub.f32 %v346, %v442
    %v475 = vsub.f32 %v347, %v443
    %v476 = vsub.f32 %v348, %v444
    %v477 = vsub.f32 %v349, %v445
    %v478 = vsub.f32 %v350, %v446
    %v479 = vsub.f32 %v351, %v447
    %v480 = vsub.f32 %v352, %v448
    %v481 = vsub.f32 %v353, %v449
    %v482 = vsub.f32 %v354, %v450
    %v483 = vsub.f32 %v355, %v451
    %v484 = vsub.f32 %v356, %v452
    %v485 = vsub.f32 %v357, %v453
    %v486 = vsub.f32 %v358, %v454
    %v487 = vsub.f32 %v359, %v455
    %v488 = vsub.f32 %v360, %v456
    %v489 = vmul.f32 %v457, %v457
    %v490 = vmul.f32 %v458, %v458
    %v491 = vmul.f32 %v459, %v459
    %v492 = vmul.f32 %v460, %v460
    %v493 = vmul.f32 %v461, %v461
    %v494 = vmul.f32 %v462, %v462
    %v495 = vmul.f32 %v463, %v463
    %v496 = vmul.f32 %v464, %v464
    %v497 = vmul.f32 %v465, %v465
    %v498 = vmul.f32 %v466, %v466
    %v499 = vmul.f32 %v467, %v467
    %v500 = vmul.f32 %v468, %v468
    %v501 = vmul.f32 %v469, %v469
    %v502 = vmul.f32 %v470, %v470
    %v503 = vmul.f32 %v471, %v471
    %v504 = vmul.f32 %v472, %v472
    %v505 = vmul.f32 %v473, %v473
    %v506 = vmul.f32 %v474, %v474
    %v507 = vmul.f32 %v475, %v475
    %v508 = vmul.f32 %v476, %v476
    %v509 = vmul.f32 %v477, %v477
    %v510 = vmul.f32 %v478, %v478
    %v511 = vmul.f32 %v479, %v479
    %v512 = vmul.f32 %v480, %v480
    %v513 = vmul.f32 %v481, %v481
    %v514 = vmul.f32 %v482, %v482
    %v515 = vmul.f32 %v483, %v483
    %v516 = vmul.f32 %v484, %v484
    %v517 = vmul.f32 %v485, %v485
    %v518 = vmul.f32 %v486, %v486
    %v519 = vmul.f32 %v487, %v487
    %v520 = vmul.f32 %v488, %v488
    %521 = vadd.xlane.f32.xlu0 %v489
    %v522 = vpop.xlane.xlu0 %521
    %523 = vadd.xlane.f32.xlu0 %v490
    %v524 = vpop.xlane.xlu0 %523
    %525 = vadd.xlane.f32.xlu0 %v491
    %v526 = vpop.xlane.xlu0 %525
    %527 = vadd.xlane.f32.xlu0 %v492
    %v528 = vpop.xlane.xlu0 %527
    %529 = vadd.xlane.f32.xlu0 %v493
    %v530 = vpop.xlane.xlu0 %529
    %531 = vadd.xlane.f32.xlu0 %v494
    %v532 = vpop.xlane.xlu0 %531
    %533 = vadd.xlane.f32.xlu0 %v495
    %v534 = vpop.xlane.xlu0 %533
    %535 = vadd.xlane.f32.xlu0 %v496
    %v536 = vpop.xlane.xlu0 %535
    %537 = vadd.xlane.f32.xlu0 %v497
    %v538 = vpop.xlane.xlu0 %537
    %539 = vadd.xlane.f32.xlu0 %v498
    %v540 = vpop.xlane.xlu0 %539
    %541 = vadd.xlane.f32.xlu0 %v499
    %v542 = vpop.xlane.xlu0 %541
    %543 = vadd.xlane.f32.xlu0 %v500
    %v544 = vpop.xlane.xlu0 %543
    %545 = vadd.xlane.f32.xlu0 %v501
    %v546 = vpop.xlane.xlu0 %545
    %547 = vadd.xlane.f32.xlu0 %v502
    %v548 = vpop.xlane.xlu0 %547
    %549 = vadd.xlane.f32.xlu0 %v503
    %v550 = vpop.xlane.xlu0 %549
    %551 = vadd.xlane.f32.xlu0 %v504
    %v552 = vpop.xlane.xlu0 %551
    %553 = vadd.xlane.f32.xlu0 %v505
    %v554 = vpop.xlane.xlu0 %553
    %555 = vadd.xlane.f32.xlu0 %v506
    %v556 = vpop.xlane.xlu0 %555
    %557 = vadd.xlane.f32.xlu0 %v507
    %v558 = vpop.xlane.xlu0 %557
    %559 = vadd.xlane.f32.xlu0 %v508
    %v560 = vpop.xlane.xlu0 %559
    %561 = vadd.xlane.f32.xlu0 %v509
    %v562 = vpop.xlane.xlu0 %561
    %563 = vadd.xlane.f32.xlu0 %v510
    %v564 = vpop.xlane.xlu0 %563
    %565 = vadd.xlane.f32.xlu0 %v511
    %v566 = vpop.xlane.xlu0 %565
    %567 = vadd.xlane.f32.xlu0 %v512
    %v568 = vpop.xlane.xlu0 %567
    %569 = vadd.xlane.f32.xlu0 %v513
    %v570 = vpop.xlane.xlu0 %569
    %571 = vadd.xlane.f32.xlu0 %v514
    %v572 = vpop.xlane.xlu0 %571
    %573 = vadd.xlane.f32.xlu0 %v515
    %v574 = vpop.xlane.xlu0 %573
    %575 = vadd.xlane.f32.xlu0 %v516
    %v576 = vpop.xlane.xlu0 %575
    %577 = vadd.xlane.f32.xlu0 %v517
    %v578 = vpop.xlane.xlu0 %577
    %579 = vadd.xlane.f32.xlu0 %v518
    %v580 = vpop.xlane.xlu0 %579
    %581 = vadd.xlane.f32.xlu0 %v519
    %v582 = vpop.xlane.xlu0 %581
    %583 = vadd.xlane.f32.xlu0 %v520
    %v584 = vpop.xlane.xlu0 %583
    %v585 = vmul.f32 %v522, 0.0078125
    %v586 = vmul.f32 %v524, 0.0078125
    %v587 = vmul.f32 %v526, 0.0078125
    %v588 = vmul.f32 %v528, 0.0078125
    %v589 = vmul.f32 %v530, 0.0078125
    %v590 = vmul.f32 %v532, 0.0078125
    %v591 = vmul.f32 %v534, 0.0078125
    %v592 = vmul.f32 %v536, 0.0078125
    %v593 = vmul.f32 %v538, 0.0078125
    %v594 = vmul.f32 %v540, 0.0078125
    %v595 = vmul.f32 %v542, 0.0078125
    %v596 = vmul.f32 %v544, 0.0078125
    %v597 = vmul.f32 %v546, 0.0078125
    %v598 = vmul.f32 %v548, 0.0078125
    %v599 = vmul.f32 %v550, 0.0078125
    %v600 = vmul.f32 %v552, 0.0078125
    %v601 = vmul.f32 %v554, 0.0078125
    %v602 = vmul.f32 %v556, 0.0078125
    %v603 = vmul.f32 %v558, 0.0078125
    %v604 = vmul.f32 %v560, 0.0078125
    %v605 = vmul.f32 %v562, 0.0078125
    %v606 = vmul.f32 %v564, 0.0078125
    %v607 = vmul.f32 %v566, 0.0078125
    %v608 = vmul.f32 %v568, 0.0078125
    %v609 = vmul.f32 %v570, 0.0078125
    %v610 = vmul.f32 %v572, 0.0078125
    %v611 = vmul.f32 %v574, 0.0078125
    %v612 = vmul.f32 %v576, 0.0078125
    %v613 = vmul.f32 %v578, 0.0078125
    %v614 = vmul.f32 %v580, 0.0078125
    %v615 = vmul.f32 %v582, 0.0078125
    %v616 = vmul.f32 %v584, 0.0078125
    %v617 = vadd.f32 %v585, 1e-05
    %v618 = vadd.f32 %v586, 1e-05
    %v619 = vadd.f32 %v587, 1e-05
    %v620 = vadd.f32 %v588, 1e-05
    %v621 = vadd.f32 %v589, 1e-05
    %v622 = vadd.f32 %v590, 1e-05
    %v623 = vadd.f32 %v591, 1e-05
    %v624 = vadd.f32 %v592, 1e-05
    %v625 = vadd.f32 %v593, 1e-05
    %v626 = vadd.f32 %v594, 1e-05
    %v627 = vadd.f32 %v595, 1e-05
    %v628 = vadd.f32 %v596, 1e-05
    %v629 = vadd.f32 %v597, 1e-05
    %v630 = vadd.f32 %v598, 1e-05
    %v631 = vadd.f32 %v599, 1e-05
    %v632 = vadd.f32 %v600, 1e-05
    %v633 = vadd.f32 %v601, 1e-05
    %v634 = vadd.f32 %v602, 1e-05
    %v635 = vadd.f32 %v603, 1e-05
    %v636 = vadd.f32 %v604, 1e-05
    %v637 = vadd.f32 %v605, 1e-05
    %v638 = vadd.f32 %v606, 1e-05
    %v639 = vadd.f32 %v607, 1e-05
    %v640 = vadd.f32 %v608, 1e-05
    %v641 = vadd.f32 %v609, 1e-05
    %v642 = vadd.f32 %v610, 1e-05
    %v643 = vadd.f32 %v611, 1e-05
    %v644 = vadd.f32 %v612, 1e-05
    %v645 = vadd.f32 %v613, 1e-05
    %v646 = vadd.f32 %v614, 1e-05
    %v647 = vadd.f32 %v615, 1e-05
    %v648 = vadd.f32 %v616, 1e-05
    %v649 = vrsqrt.pop %v617
    %v650 = vrsqrt.pop %v618
    %v651 = vrsqrt.pop %v619
    %v652 = vrsqrt.pop %v620
    %v653 = vrsqrt.pop %v621
    %v654 = vrsqrt.pop %v622
    %v655 = vrsqrt.pop %v623
    %v656 = vrsqrt.pop %v624
    %v657 = vrsqrt.pop %v625
    %v658 = vrsqrt.pop %v626
    %v659 = vrsqrt.pop %v627
    %v660 = vrsqrt.pop %v628
    %v661 = vrsqrt.pop %v629
    %v662 = vrsqrt.pop %v630
    %v663 = vrsqrt.pop %v631
    %v664 = vrsqrt.pop %v632
    %v665 = vrsqrt.pop %v633
    %v666 = vrsqrt.pop %v634
    %v667 = vrsqrt.pop %v635
    %v668 = vrsqrt.pop %v636
    %v669 = vrsqrt.pop %v637
    %v670 = vrsqrt.pop %v638
    %v671 = vrsqrt.pop %v639
    %v672 = vrsqrt.pop %v640
    %v673 = vrsqrt.pop %v641
    %v674 = vrsqrt.pop %v642
    %v675 = vrsqrt.pop %v643
    %v676 = vrsqrt.pop %v644
    %v677 = vrsqrt.pop %v645
    %v678 = vrsqrt.pop %v646
    %v679 = vrsqrt.pop %v647
    %v680 = vrsqrt.pop %v648
    %v681 = vld [vmem:[%s3] sm:$0x1]
    %v683 = vlaneseq
    %v684 = vshrl.u32 %v683, 7
    %v685 = vsub.s32 0, %v684
    %v686 = vrot.slane %v681, %v685
    %v688 = vmul.f32 %v686, %v649
    %v689 = vmul.f32 %v686, %v650
    %v690 = vmul.f32 %v686, %v651
    %v691 = vmul.f32 %v686, %v652
    %v692 = vmul.f32 %v686, %v653
    %v693 = vmul.f32 %v686, %v654
    %v694 = vmul.f32 %v686, %v655
    %v695 = vmul.f32 %v686, %v656
    %v696 = vmul.f32 %v686, %v657
    %v697 = vmul.f32 %v686, %v658
    %v698 = vmul.f32 %v686, %v659
    %v699 = vmul.f32 %v686, %v660
    %v700 = vmul.f32 %v686, %v661
    %v701 = vmul.f32 %v686, %v662
    %v702 = vmul.f32 %v686, %v663
    %v703 = vmul.f32 %v686, %v664
    %v704 = vmul.f32 %v686, %v665
    %v705 = vmul.f32 %v686, %v666
    %v706 = vmul.f32 %v686, %v667
    %v707 = vmul.f32 %v686, %v668
    %v708 = vmul.f32 %v686, %v669
    %v709 = vmul.f32 %v686, %v670
    %v710 = vmul.f32 %v686, %v671
    %v711 = vmul.f32 %v686, %v672
    %v712 = vmul.f32 %v686, %v673
    %v713 = vmul.f32 %v686, %v674
    %v714 = vmul.f32 %v686, %v675
    %v715 = vmul.f32 %v686, %v676
    %v716 = vmul.f32 %v686, %v677
    %v717 = vmul.f32 %v686, %v678
    %v718 = vmul.f32 %v686, %v679
    %v719 = vmul.f32 %v686, %v680
    %v720 = vmul.f32 %v457, %v688
    %v721 = vmul.f32 %v458, %v689
    %v722 = vmul.f32 %v459, %v690
    %v723 = vmul.f32 %v460, %v691
    %v724 = vmul.f32 %v461, %v692
    %v725 = vmul.f32 %v462, %v693
    %v726 = vmul.f32 %v463, %v694
    %v727 = vmul.f32 %v464, %v695
    %v728 = vmul.f32 %v465, %v696
    %v729 = vmul.f32 %v466, %v697
    %v730 = vmul.f32 %v467, %v698
    %v731 = vmul.f32 %v468, %v699
    %v732 = vmul.f32 %v469, %v700
    %v733 = vmul.f32 %v470, %v701
    %v734 = vmul.f32 %v471, %v702
    %v735 = vmul.f32 %v472, %v703
    %v736 = vmul.f32 %v473, %v704
    %v737 = vmul.f32 %v474, %v705
    %v738 = vmul.f32 %v475, %v706
    %v739 = vmul.f32 %v476, %v707
    %v740 = vmul.f32 %v477, %v708
    %v741 = vmul.f32 %v478, %v709
    %v742 = vmul.f32 %v479, %v710
    %v743 = vmul.f32 %v480, %v711
    %v744 = vmul.f32 %v481, %v712
    %v745 = vmul.f32 %v482, %v713
    %v746 = vmul.f32 %v483, %v714
    %v747 = vmul.f32 %v484, %v715
    %v748 = vmul.f32 %v485, %v716
    %v749 = vmul.f32 %v486, %v717
    %v750 = vmul.f32 %v487, %v718
    %v751 = vmul.f32 %v488, %v719
    %v752 = vld [vmem:[%s4] sm:$0x1]
    %v754 = vlaneseq
    %v755 = vshrl.u32 %v754, 7
    %v756 = vsub.s32 0, %v755
    %v757 = vrot.slane %v752, %v756
    %v759 = vadd.f32 %v720, %v757
    %v760 = vadd.f32 %v721, %v757
    %v761 = vadd.f32 %v722, %v757
    %v762 = vadd.f32 %v723, %v757
    %v763 = vadd.f32 %v724, %v757
    %v764 = vadd.f32 %v725, %v757
    %v765 = vadd.f32 %v726, %v757
    %v766 = vadd.f32 %v727, %v757
    %v767 = vadd.f32 %v728, %v757
    %v768 = vadd.f32 %v729, %v757
    %v769 = vadd.f32 %v730, %v757
    %v770 = vadd.f32 %v731, %v757
    %v771 = vadd.f32 %v732, %v757
    %v772 = vadd.f32 %v733, %v757
    %v773 = vadd.f32 %v734, %v757
    %v774 = vadd.f32 %v735, %v757
    %v775 = vadd.f32 %v736, %v757
    %v776 = vadd.f32 %v737, %v757
    %v777 = vadd.f32 %v738, %v757
    %v778 = vadd.f32 %v739, %v757
    %v779 = vadd.f32 %v740, %v757
    %v780 = vadd.f32 %v741, %v757
    %v781 = vadd.f32 %v742, %v757
    %v782 = vadd.f32 %v743, %v757
    %v783 = vadd.f32 %v744, %v757
    %v784 = vadd.f32 %v745, %v757
    %v785 = vadd.f32 %v746, %v757
    %v786 = vadd.f32 %v747, %v757
    %v787 = vadd.f32 %v748, %v757
    %v788 = vadd.f32 %v749, %v757
    %v789 = vadd.f32 %v750, %v757
    %v790 = vadd.f32 %v751, %v757
    %791 = vst [vmem:[#allocation7] sm:$0xff] %v759
    %792 = vst [vmem:[#allocation7 + $0x8] sm:$0xff] %v760
    %793 = vst [vmem:[#allocation7 + $0x10] sm:$0xff] %v761
    %794 = vst [vmem:[#allocation7 + $0x18] sm:$0xff] %v762
    %795 = vst [vmem:[#allocation7 + $0x20] sm:$0xff] %v763
    %796 = vst [vmem:[#allocation7 + $0x28] sm:$0xff] %v764
    %797 = vst [vmem:[#allocation7 + $0x30] sm:$0xff] %v765
    %798 = vst [vmem:[#allocation7 + $0x38] sm:$0xff] %v766
    %799 = vst [vmem:[#allocation7 + $0x40] sm:$0xff] %v767
    %800 = vst [vmem:[#allocation7 + $0x48] sm:$0xff] %v768
    %801 = vst [vmem:[#allocation7 + $0x50] sm:$0xff] %v769
    %802 = vst [vmem:[#allocation7 + $0x58] sm:$0xff] %v770
    %803 = vst [vmem:[#allocation7 + $0x60] sm:$0xff] %v771
    %804 = vst [vmem:[#allocation7 + $0x68] sm:$0xff] %v772
    %805 = vst [vmem:[#allocation7 + $0x70] sm:$0xff] %v773
    %806 = vst [vmem:[#allocation7 + $0x78] sm:$0xff] %v774
    %807 = vst [vmem:[#allocation7 + $0x80] sm:$0xff] %v775
    %808 = vst [vmem:[#allocation7 + $0x88] sm:$0xff] %v776
    %809 = vst [vmem:[#allocation7 + $0x90] sm:$0xff] %v777
    %810 = vst [vmem:[#allocation7 + $0x98] sm:$0xff] %v778
    %811 = vst [vmem:[#allocation7 + $0xa0] sm:$0xff] %v779
    %812 = vst [vmem:[#allocation7 + $0xa8] sm:$0xff] %v780
    %813 = vst [vmem:[#allocation7 + $0xb0] sm:$0xff] %v781
    %814 = vst [vmem:[#allocation7 + $0xb8] sm:$0xff] %v782
    %815 = vst [vmem:[#allocation7 + $0xc0] sm:$0xff] %v783
    %816 = vst [vmem:[#allocation7 + $0xc8] sm:$0xff] %v784
    %817 = vst [vmem:[#allocation7 + $0xd0] sm:$0xff] %v785
    %818 = vst [vmem:[#allocation7 + $0xd8] sm:$0xff] %v786
    %819 = vst [vmem:[#allocation7 + $0xe0] sm:$0xff] %v787
    %820 = vst [vmem:[#allocation7 + $0xe8] sm:$0xff] %v788
    %821 = vst [vmem:[#allocation7 + $0xf0] sm:$0xff] %v789
    %822 = vst [vmem:[#allocation7 + $0xf8] sm:$0xff] %v790
    // Predicated region
    $region30: #{tpu_custom_call.1} parent=1 // pred_check
      _
    $region31: #{tpu_custom_call.1} parent=1 // pred_check_branch
      %824 = sbr.rel (0) target = $region33
    $region32: #{tpu_custom_call.1} parent=1 // pred_region
      %s826 = ssub.s32 4096, 4096
      %827 = vsyncadd [#allocation4], %s826
      %s828 = sshll.u32 [#allocation7], 4
      %s829 = int_to_ptr.vmem [resolvable:$true] %s828
      %834 = dma.vmem_to_hbm [thread:$0]  %s829, 4096, %s5, [#allocation4], 128, 128, 8
    $region33: #{tpu_custom_call.1} parent=1 // pred_fallthru
      _
    // Predicated region
    $region34: #{tpu_custom_call.1} parent=1 // pred_check
      _
    $region35: #{tpu_custom_call.1} parent=1 // pred_check_branch
      %836 = sbr.rel (0) target = $region37
    $region36: #{tpu_custom_call.1} parent=1 // pred_region
      %837 = dma.done [#allocation4], 4096
    $region37: #{tpu_custom_call.1} parent=1 // pred_fallthru
      _
    %838 = vsyncpa [#allocation3], 1
    %839 = vsyncpa [#allocation6], 1
    %840 = vsyncpa [#allocation4], 1

</llo_original>
